<compile_context>
chip_gen: v6e
topology: v6e:2x2x1
jax: 0.10.0
libtpu: 0.0.40
codegen_flags: <defaults>
</compile_context>

<pallas_src>
import jax
import jax.numpy as jnp
from jax.experimental import pallas as pl
from jax.experimental.pallas import tpu as pltpu

IN_FEATURES = 121   # real input features (lane-padded to 128 by Mosaic layout)
H1 = 256
H2 = 128
OUT = 128


def _round_up(n, m):
    return ((n + m - 1) // m) * m


def encoder_kernel(x_ref, w1_ref, b1_ref, w2_ref, b2_ref, w3_ref, o_ref):
    # In-kernel cast of the f32 input tile to bf16 (hidden under MXU work).
    x_bf = x_ref[...].astype(jnp.bfloat16)
    # l1: Linear(121 -> 256) + ReLU    (bf16 matmul inputs, f32 accumulate)
    h1 = jnp.dot(x_bf, w1_ref[...], preferred_element_type=jnp.float32)
    h1 = jnp.maximum(h1 + b1_ref[...], 0.0)                     # f32 bias + ReLU
    # l2: Linear(256 -> 128) + ReLU
    h2 = jnp.dot(h1.astype(jnp.bfloat16), w2_ref[...],
                 preferred_element_type=jnp.float32)
    h2 = jnp.maximum(h2 + b2_ref[...], 0.0)                     # f32 bias + ReLU
    # l3: Linear(128 -> 128, bias=False)
    out = jnp.dot(h2.astype(jnp.bfloat16), w3_ref[...],
                  preferred_element_type=jnp.float32)
    o_ref[...] = out.astype(o_ref.dtype)


def prepare_encoder_params(w1, b1, w2, b2, w3):
    """One-time conversion of torch-style Linear params into kernel dtypes/shapes.

    Weights are stored (in, out) and cast to bf16; biases become (1, H) f32.
    Do this once at init — not per forward call.
    """
    return (
        w1.astype(jnp.bfloat16),
        b1.reshape(1, H1).astype(jnp.float32),
        w2.astype(jnp.bfloat16),
        b2.reshape(1, H2).astype(jnp.float32),
        w3.astype(jnp.bfloat16),
    )


def encoder_forward(x, params, *, batch_tile=1024, out_dtype=jnp.bfloat16):
    """x: (B, 121) f32 (or bf16). params: output of prepare_encoder_params.

    Returns (B, 128) in out_dtype (bf16 default; pass jnp.float32 if needed).
    """
    w1_bf, b1_2d, w2_bf, b2_2d, w3_bf = params
    B, F = x.shape
    assert F == IN_FEATURES, f"expected {IN_FEATURES} input features, got {F}"

    # Tile sizing:
    #  * large tiles (default up to 1024 rows) to amortize the ~0.35us/step cost,
    #  * but cap so the grid keeps ~4 iterations -> both v7x TCs get work and
    #    input prefetch / output writeback still overlap compute.
    bt = max(8, min(batch_tile, _round_up(B, 8)))
    bt = min(bt, max(8, _round_up(pl.cdiv(B, 4), 8)))
    grid = (pl.cdiv(B, bt),)   # partial last tile is masked by Pallas

    flops = 2 * B * (IN_FEATURES * H1 + H1 * H2 + H2 * OUT)
    bytes_accessed = (
        B * IN_FEATURES * x.dtype.itemsize            # x
        + (IN_FEATURES * H1 + H1 * H2 + H2 * OUT) * 2  # bf16 weights
        + (H1 + H2) * 4                                # f32 biases
        + B * OUT * jnp.dtype(out_dtype).itemsize      # output
    )

    return pl.pallas_call(
        encoder_kernel,
        out_shape=jax.ShapeDtypeStruct((B, OUT), out_dtype),
        grid_spec=pltpu.PrefetchScalarGridSpec(
            num_scalar_prefetch=0,
            grid=grid,
            in_specs=[
                # x: full (unpadded) feature width; only the batch dim is tiled.
                pl.BlockSpec((bt, IN_FEATURES), lambda i: (i, 0)),
                # Weights / biases: constant block index -> fetched once, kept
                # resident in VMEM for the whole grid.
                pl.BlockSpec((IN_FEATURES, H1), lambda i: (0, 0)),   # w1
                pl.BlockSpec((1, H1), lambda i: (0, 0)),             # b1
                pl.BlockSpec((H1, H2), lambda i: (0, 0)),            # w2
                pl.BlockSpec((1, H2), lambda i: (0, 0)),             # b2
                pl.BlockSpec((H2, OUT), lambda i: (0, 0)),           # w3
            ],
            out_specs=pl.BlockSpec((bt, OUT), lambda i: (i, 0)),
        ),
        compiler_params=pltpu.CompilerParams(
            dimension_semantics=("parallel",)),   # shards batch tiles across TCs (v7x)
        cost_estimate=pl.CostEstimate(
            flops=flops, transcendentals=0, bytes_accessed=bytes_accessed),
    )(x, w1_bf, b1_2d, w2_bf, b2_2d, w3_bf)


def reference_forward(x, w1, b1, w2, b2, w3):
    """Same numerics as the kernel: bf16 matmul inputs, f32 accumulate/elementwise."""
    bf = jnp.bfloat16
    h1 = jnp.dot(x.astype(bf), w1.astype(bf), preferred_element_type=jnp.float32)
    h1 = jnp.maximum(h1 + b1, 0.0)
    h2 = jnp.dot(h1.astype(bf), w2.astype(bf), preferred_element_type=jnp.float32)
    h2 = jnp.maximum(h2 + b2, 0.0)
    return jnp.dot(h2.astype(bf), w3.astype(bf), preferred_element_type=jnp.float32)


if __name__ == "__main__":
    key = jax.random.PRNGKey(0)
    k_x, k_w1, k_b1, k_w2, k_b2, k_w3 = jax.random.split(key, 6)

    # Batch that is NOT a tile multiple: exercises the pl.cdiv grid + masked
    # partial last tile, and gives multiple grid steps.
    B = 300
    x = jax.random.normal(k_x, (B, IN_FEATURES), dtype=jnp.float32)

    # Deterministic synthetic parameters (torch Linear weights, stored (in, out)).
    w1 = jax.random.normal(k_w1, (IN_FEATURES, H1), dtype=jnp.float32) * 0.05
    b1 = jax.random.normal(k_b1, (H1,), dtype=jnp.float32) * 0.05
    w2 = jax.random.normal(k_w2, (H1, H2), dtype=jnp.float32) * 0.05
    b2 = jax.random.normal(k_b2, (H2,), dtype=jnp.float32) * 0.05
    w3 = jax.random.normal(k_w3, (H2, OUT), dtype=jnp.float32) * 0.05

    # One-time param conversion (hoisted out of the forward path).
    params = prepare_encoder_params(w1, b1, w2, b2, w3)

    out = encoder_forward(x, params)             # bf16 output by default
    out = jax.block_until_ready(out)

    ref = reference_forward(x, w1, b1, w2, b2, w3)
    assert out.shape == (B, OUT)
    assert jnp.allclose(out.astype(jnp.float32), ref, atol=2e-2, rtol=2e-2), \
        "mismatch vs reference"

    print("KERNEL_OK")
</pallas_src>

<mosaic_0001>
module attributes {stable_mosaic.version = 11 : i64} {
  func.func @encoder_kernel(%arg0: i32, %arg1: memref<80x121xf32, #tpu.memory_space<vmem>>, %arg2: memref<121x256xbf16, #tpu.memory_space<vmem>>, %arg3: memref<1x256xf32, #tpu.memory_space<vmem>>, %arg4: memref<256x128xbf16, #tpu.memory_space<vmem>>, %arg5: memref<1x128xf32, #tpu.memory_space<vmem>>, %arg6: memref<128x128xbf16, #tpu.memory_space<vmem>>, %arg7: memref<80x128xbf16, #tpu.memory_space<vmem>>) attributes {dimension_semantics = [#tpu.dimension_semantics<parallel>], iteration_bounds = array<i64: 4>, scalar_prefetch = 0 : i64, scratch_operands = 0 : i64, tpu.core_type = #tpu.core_type<tc>, window_params = [{transform_indices = @transform_0, window_bounds = array<i64: 80, 121>}, {pipeline_mode = #tpu.pipeline_mode<synchronous>, transform_indices = @transform_1, window_bounds = array<i64: 121, 256>}, {pipeline_mode = #tpu.pipeline_mode<synchronous>, transform_indices = @transform_2, window_bounds = array<i64: 1, 256>}, {pipeline_mode = #tpu.pipeline_mode<synchronous>, transform_indices = @transform_3, window_bounds = array<i64: 256, 128>}, {pipeline_mode = #tpu.pipeline_mode<synchronous>, transform_indices = @transform_4, window_bounds = array<i64: 1, 128>}, {pipeline_mode = #tpu.pipeline_mode<synchronous>, transform_indices = @transform_5, window_bounds = array<i64: 128, 128>}, {transform_indices = @transform_6, window_bounds = array<i64: 80, 128>}]} {
    %c0 = arith.constant 0 : index
    %c0_0 = arith.constant 0 : index
    %0 = vector.load %arg1[%c0, %c0_0] : memref<80x121xf32, #tpu.memory_space<vmem>>, vector<80x121xf32>
    %1 = arith.truncf %0 : vector<80x121xf32> to vector<80x121xbf16>
    %c0_1 = arith.constant 0 : index
    %c0_2 = arith.constant 0 : index
    %2 = vector.load %arg2[%c0_1, %c0_2] : memref<121x256xbf16, #tpu.memory_space<vmem>>, vector<121x256xbf16>
    %cst = arith.constant dense<0.000000e+00> : vector<80x256xf32>
    %3 = tpu.matmul %1, %2, %cst {dimension_numbers = #tpu.dot_dimension_numbers<[1], [0], [0], [1], [0, 0, 1, 1], [], []>} : vector<80x121xbf16>, vector<121x256xbf16>, vector<80x256xf32> -> vector<80x256xf32>
    %c0_3 = arith.constant 0 : index
    %c0_4 = arith.constant 0 : index
    %4 = vector.load %arg3[%c0_3, %c0_4] : memref<1x256xf32, #tpu.memory_space<vmem>>, vector<1x256xf32>
    %5 = vector.broadcast %4 : vector<1x256xf32> to vector<80x256xf32>
    %6 = arith.addf %3, %5 : vector<80x256xf32>
    %cst_5 = arith.constant 0.000000e+00 : f32
    %7 = vector.broadcast %cst_5 : f32 to vector<80x256xf32>
    %8 = arith.maximumf %6, %7 : vector<80x256xf32>
    %9 = arith.truncf %8 : vector<80x256xf32> to vector<80x256xbf16>
    %c0_6 = arith.constant 0 : index
    %c0_7 = arith.constant 0 : index
    %10 = vector.load %arg4[%c0_6, %c0_7] : memref<256x128xbf16, #tpu.memory_space<vmem>>, vector<256x128xbf16>
    %cst_8 = arith.constant dense<0.000000e+00> : vector<80x128xf32>
    %11 = tpu.matmul %9, %10, %cst_8 {dimension_numbers = #tpu.dot_dimension_numbers<[1], [0], [0], [1], [0, 0, 1, 1], [], []>} : vector<80x256xbf16>, vector<256x128xbf16>, vector<80x128xf32> -> vector<80x128xf32>
    %c0_9 = arith.constant 0 : index
    %c0_10 = arith.constant 0 : index
    %12 = vector.load %arg5[%c0_9, %c0_10] : memref<1x128xf32, #tpu.memory_space<vmem>>, vector<1x128xf32>
    %13 = vector.broadcast %12 : vector<1x128xf32> to vector<80x128xf32>
    %14 = arith.addf %11, %13 : vector<80x128xf32>
    %cst_11 = arith.constant 0.000000e+00 : f32
    %15 = vector.broadcast %cst_11 : f32 to vector<80x128xf32>
    %16 = arith.maximumf %14, %15 : vector<80x128xf32>
    %17 = arith.truncf %16 : vector<80x128xf32> to vector<80x128xbf16>
    %c0_12 = arith.constant 0 : index
    %c0_13 = arith.constant 0 : index
    %18 = vector.load %arg6[%c0_12, %c0_13] : memref<128x128xbf16, #tpu.memory_space<vmem>>, vector<128x128xbf16>
    %cst_14 = arith.constant dense<0.000000e+00> : vector<80x128xf32>
    %19 = tpu.matmul %17, %18, %cst_14 {dimension_numbers = #tpu.dot_dimension_numbers<[1], [0], [0], [1], [0, 0, 1, 1], [], []>} : vector<80x128xbf16>, vector<128x128xbf16>, vector<80x128xf32> -> vector<80x128xf32>
    %20 = arith.truncf %19 : vector<80x128xf32> to vector<80x128xbf16>
    %c0_15 = arith.constant 0 : index
    %c0_16 = arith.constant 0 : index
    %21 = vector.load %arg7[%c0_15, %c0_16] : memref<80x128xbf16, #tpu.memory_space<vmem>>, vector<80x128xbf16>
    tpu.vector_store %arg7[%c0_15, %c0_16], %20 {strides = array<i32>} : memref<80x128xbf16, #tpu.memory_space<vmem>>, vector<80x128xbf16>,
    return
  }
  func.func @transform_0(%arg0: i32) -> (i32, i32) {
    %c0_i32 = arith.constant 0 : i32
    %c0_i32_0 = arith.constant 0 : i32
    return %arg0, %c0_i32 : i32, i32
  }
  func.func @transform_1(%arg0: i32) -> (i32, i32) {
    %c0_i32 = arith.constant 0 : i32
    %c0_i32_0 = arith.constant 0 : i32
    %c0_i32_1 = arith.constant 0 : i32
    return %c0_i32, %c0_i32_0 : i32, i32
  }
  func.func @transform_2(%arg0: i32) -> (i32, i32) {
    %c0_i32 = arith.constant 0 : i32
    %c0_i32_0 = arith.constant 0 : i32
    %c0_i32_1 = arith.constant 0 : i32
    return %c0_i32, %c0_i32_0 : i32, i32
  }
  func.func @transform_3(%arg0: i32) -> (i32, i32) {
    %c0_i32 = arith.constant 0 : i32
    %c0_i32_0 = arith.constant 0 : i32
    %c0_i32_1 = arith.constant 0 : i32
    return %c0_i32, %c0_i32_0 : i32, i32
  }
  func.func @transform_4(%arg0: i32) -> (i32, i32) {
    %c0_i32 = arith.constant 0 : i32
    %c0_i32_0 = arith.constant 0 : i32
    %c0_i32_1 = arith.constant 0 : i32
    return %c0_i32, %c0_i32_0 : i32, i32
  }
  func.func @transform_5(%arg0: i32) -> (i32, i32) {
    %c0_i32 = arith.constant 0 : i32
    %c0_i32_0 = arith.constant 0 : i32
    %c0_i32_1 = arith.constant 0 : i32
    return %c0_i32, %c0_i32_0 : i32, i32
  }
  func.func @transform_6(%arg0: i32) -> (i32, i32) {
    %c0_i32 = arith.constant 0 : i32
    %c0_i32_0 = arith.constant 0 : i32
    return %arg0, %c0_i32 : i32, i32
  }
}

</mosaic_0001>

<llo_original>
// kernel: tpu_custom_call.1
$region0: #{tpu_custom_call.1}
  #allocation0 [shape = 'u32[]', space=smem, size = 0x4, offset = 0x4, fixed_abs, tag = 'smem constant byte address 0x4 - core index']
  #allocation1 [shape = 'u32[144,128]{1,0:T(1,128)}', space=vmem, size = 0x12000, scoped, tag = 'internal scratch']
  %s0 = inlined_call_operand.hbm [shape: f32[300,121], index: 0, kind: input, shape index: {}]
  %s1 = inlined_call_operand.hbm [shape: bf16[121,256], index: 1, kind: input, shape index: {}]
  %s2 = inlined_call_operand.vmem [shape: f32[1,256], index: 2, kind: input, shape index: {}]
  %s3 = inlined_call_operand.hbm [shape: bf16[256,128], index: 3, kind: input, shape index: {}]
  %s4 = inlined_call_operand.vmem [shape: f32[1,128], index: 4, kind: input, shape index: {}]
  %s5 = inlined_call_operand.hbm [shape: bf16[128,128], index: 5, kind: input, shape index: {}]
  %s6 = inlined_call_operand.hbm [shape: bf16[300,128], index: 6, kind: output, shape index: {}]
  %s7 = sld [smem:[#allocation0]]
  $region73: #{tpu_custom_call.1} parent=0
    _
  %s9 = ssub.s32 1, %s7
  %s10 = scalar_select 0, %s9, %s7
  $region1: #{tpu_custom_call.1} parent=0
    #allocation2 [shape = 'u8[81920]{0}', space=vmem, size = 0x14000, scoped, tag = 'input window, operand 0']
    #allocation3 [shape = 's32[2]{0}', space=sflag, size = 0x8, scoped, tag = 'scoped memory for tpu_custom_call.1']
    #allocation4 [shape = 's32[2]{0}', space=sflag, size = 0x8, scoped, tag = 'scoped memory for tpu_custom_call.1']
    #allocation5 [shape = 'u8[65536]{0}', space=vmem, size = 0x10000, scoped, tag = 'input window, operand 1, single buffered']
    #allocation6 [shape = 's32[1]{0}', space=sflag, size = 0x4, scoped, tag = 'scoped memory for tpu_custom_call.1']
    #allocation7 [shape = 'u8[65536]{0}', space=vmem, size = 0x10000, scoped, tag = 'input window, operand 3, single buffered']
    #allocation8 [shape = 'u8[32768]{0}', space=vmem, size = 0x8000, scoped, tag = 'input window, operand 5, single buffered']
    #allocation9 [shape = 's32[1]{0}', space=sflag, size = 0x4, scoped, tag = 'scoped memory for tpu_custom_call.1']
    #allocation10 [shape = 'u8[40960]{0}', space=vmem, size = 0xa000, scoped, tag = 'output window, operand 0']
    %11 = vsyncpa [#allocation3], 0
    %s12 = scalar_lea.sflag [#allocation3], 1
    %13 = vsyncpa %s12, 0
    %14 = vsyncpa [#allocation6], 0
    %15 = vsyncpa [#allocation9], 0
    %16 = vsyncpa [#allocation4], 0
    %s17 = scalar_lea.sflag [#allocation4], 1
    %18 = vsyncpa %s17, 0
    loop: start=0, step=1, limit=6
    $region2: #{tpu_custom_call.1} parent=1 // loop_pre_header
      _
    $region3: #{tpu_custom_call.1} parent=1 // loop_header
      %s20 = sphi 0, %s24
      %p21 = scmp.ge.s32.totalorder %s20, 6
      %s30 = sphi 0, %s32
      %s33 = sphi 0, %s30
      %s34 = sphi 0, %s33
      %s50 = sphi 0, %s34
      %s54 = sphi 0, %s54
      %s56 = sphi 0, %s54
      %s57 = sphi 0, %s56
      %s71 = sphi 0, %s57
      %s75 = sphi 0, %s75
      %s77 = sphi 0, %s75
      %s78 = sphi 0, %s77
      %s92 = sphi 0, %s78
      %s96 = sphi 0, %s96
      %s98 = sphi 0, %s96
      %s99 = sphi 0, %s98
      %s113 = sphi 0, %s99
      %s117 = sphi 0, %s117
      %s119 = sphi 0, %s117
      %s120 = sphi 0, %s119
      %s134 = sphi 0, %s120
      %s138 = sphi 0, %s138
      %s140 = sphi 0, %s138
      %s141 = sphi 0, %s140
      %s155 = sphi 0, %s141
      %s161 = sphi 0, %s163
      %s164 = sphi 0, %s161
      %s165 = sphi 0, %s164
      %s181 = sphi 0, %s165
    $region4: #{tpu_custom_call.1} parent=1 // loop_header_branch
      %23 = sbr.rel (%p21) target = $region8
    $region5: #{tpu_custom_call.1} parent=1 // loop_body
      %s25 = ssub.s32 %s20, 1
      %s26 = ssub.s32 %s20, 2
      %s27 = sadd.s32 %s20, 1
      %s28 = ssub.s32 %s20, %s27
      %p29 = scmp.eq.s32.totalorder %s28, 0
      %s31 = sadd.s32 %s30, 1
      %s32 = scalar_select %p29, %s30, %s31
      %p35 = pneg %p29
      %p36 = scmp.eq.s32.totalorder %s20, 3
      %p37 = por %p35, %p36
      %p38 = scmp.ne.s32.totalorder %s30, %s33
      %p39 = scmp.eq.s32.totalorder %s20, 0
      %p40 = por %p38, %p39
      %p41 = scmp.ne.s32.totalorder %s30, %s33
      %p42 = scmp.eq.s32.totalorder %s25, 3
      %p43 = por %p41, %p42
      %p44 = scmp.ne.s32.totalorder %s33, %s34
      %p45 = scmp.eq.s32.totalorder %s25, 0
      %p46 = por %p44, %p45
      %p47 = scmp.ne.s32.totalorder %s33, %s34
      %p48 = scmp.eq.s32.totalorder %s26, 3
      %p49 = por %p47, %p48
      %p51 = scmp.ne.s32.totalorder %s34, %s50
      %p52 = scmp.eq.s32.totalorder %s26, 0
      %p53 = por %p51, %p52
      %s55 = sadd.s32 %s54, 1
      %p58 = scmp.eq.s32.totalorder %s20, 3
      %p59 = scmp.ne.s32.totalorder %s54, %s56
      %p60 = scmp.eq.s32.totalorder %s20, 0
      %p61 = por %p59, %p60
      %p62 = scmp.ne.s32.totalorder %s54, %s56
      %p63 = scmp.eq.s32.totalorder %s25, 3
      %p64 = por %p62, %p63
      %p65 = scmp.ne.s32.totalorder %s56, %s57
      %p66 = scmp.eq.s32.totalorder %s25, 0
      %p67 = por %p65, %p66
      %p68 = scmp.ne.s32.totalorder %s56, %s57
      %p69 = scmp.eq.s32.totalorder %s26, 3
      %p70 = por %p68, %p69
      %p72 = scmp.ne.s32.totalorder %s57, %s71
      %p73 = scmp.eq.s32.totalorder %s26, 0
      %p74 = por %p72, %p73
      %s76 = sadd.s32 %s75, 1
      %p79 = scmp.eq.s32.totalorder %s20, 3
      %p80 = scmp.ne.s32.totalorder %s75, %s77
      %p81 = scmp.eq.s32.totalorder %s20, 0
      %p82 = por %p80, %p81
      %p83 = scmp.ne.s32.totalorder %s75, %s77
      %p84 = scmp.eq.s32.totalorder %s25, 3
      %p85 = por %p83, %p84
      %p86 = scmp.ne.s32.totalorder %s77, %s78
      %p87 = scmp.eq.s32.totalorder %s25, 0
      %p88 = por %p86, %p87
      %p89 = scmp.ne.s32.totalorder %s77, %s78
      %p90 = scmp.eq.s32.totalorder %s26, 3
      %p91 = por %p89, %p90
      %p93 = scmp.ne.s32.totalorder %s78, %s92
      %p94 = scmp.eq.s32.totalorder %s26, 0
      %p95 = por %p93, %p94
      %s97 = sadd.s32 %s96, 1
      %p100 = scmp.eq.s32.totalorder %s20, 3
      %p101 = scmp.ne.s32.totalorder %s96, %s98
      %p102 = scmp.eq.s32.totalorder %s20, 0
      %p103 = por %p101, %p102
      %p104 = scmp.ne.s32.totalorder %s96, %s98
      %p105 = scmp.eq.s32.totalorder %s25, 3
      %p106 = por %p104, %p105
      %p107 = scmp.ne.s32.totalorder %s98, %s99
      %p108 = scmp.eq.s32.totalorder %s25, 0
      %p109 = por %p107, %p108
      %p110 = scmp.ne.s32.totalorder %s98, %s99
      %p111 = scmp.eq.s32.totalorder %s26, 3
      %p112 = por %p110, %p111
      %p114 = scmp.ne.s32.totalorder %s99, %s113
      %p115 = scmp.eq.s32.totalorder %s26, 0
      %p116 = por %p114, %p115
      %s118 = sadd.s32 %s117, 1
      %p121 = scmp.eq.s32.totalorder %s20, 3
      %p122 = scmp.ne.s32.totalorder %s117, %s119
      %p123 = scmp.eq.s32.totalorder %s20, 0
      %p124 = por %p122, %p123
      %p125 = scmp.ne.s32.totalorder %s117, %s119
      %p126 = scmp.eq.s32.totalorder %s25, 3
      %p127 = por %p125, %p126
      %p128 = scmp.ne.s32.totalorder %s119, %s120
      %p129 = scmp.eq.s32.totalorder %s25, 0
      %p130 = por %p128, %p129
      %p131 = scmp.ne.s32.totalorder %s119, %s120
      %p132 = scmp.eq.s32.totalorder %s26, 3
      %p133 = por %p131, %p132
      %p135 = scmp.ne.s32.totalorder %s120, %s134
      %p136 = scmp.eq.s32.totalorder %s26, 0
      %p137 = por %p135, %p136
      %s139 = sadd.s32 %s138, 1
      %p142 = scmp.eq.s32.totalorder %s20, 3
      %p143 = scmp.ne.s32.totalorder %s138, %s140
      %p144 = scmp.eq.s32.totalorder %s20, 0
      %p145 = por %p143, %p144
      %p146 = scmp.ne.s32.totalorder %s138, %s140
      %p147 = scmp.eq.s32.totalorder %s25, 3
      %p148 = por %p146, %p147
      %p149 = scmp.ne.s32.totalorder %s140, %s141
      %p150 = scmp.eq.s32.totalorder %s25, 0
      %p151 = por %p149, %p150
      %p152 = scmp.ne.s32.totalorder %s140, %s141
      %p153 = scmp.eq.s32.totalorder %s26, 3
      %p154 = por %p152, %p153
      %p156 = scmp.ne.s32.totalorder %s141, %s155
      %p157 = scmp.eq.s32.totalorder %s26, 0
      %p158 = por %p156, %p157
      %s159 = ssub.s32 %s20, %s27
      %p160 = scmp.eq.s32.totalorder %s159, 0
      %s162 = sadd.s32 %s161, 1
      %s163 = scalar_select %p160, %s161, %s162
      %p166 = pneg %p160
      %p167 = scmp.eq.s32.totalorder %s20, 3
      %p168 = por %p166, %p167
      %p169 = scmp.ne.s32.totalorder %s161, %s164
      %p170 = scmp.eq.s32.totalorder %s20, 0
      %p171 = por %p169, %p170
      %p172 = scmp.ne.s32.totalorder %s161, %s164
      %p173 = scmp.eq.s32.totalorder %s25, 3
      %p174 = por %p172, %p173
      %p175 = scmp.ne.s32.totalorder %s164, %s165
      %p176 = scmp.eq.s32.totalorder %s25, 0
      %p177 = por %p175, %p176
      %p178 = scmp.ne.s32.totalorder %s164, %s165
      %p179 = scmp.eq.s32.totalorder %s26, 3
      %p180 = por %p178, %p179
      %p182 = scmp.ne.s32.totalorder %s165, %s181
      %p183 = scmp.eq.s32.totalorder %s26, 0
      %p184 = por %p182, %p183
      %p185 = scmp.le.s32.totalorder 1, %s20
      %p186 = scmp.lt.s32.totalorder %s20, 5
      %p187 = pnand %p185, %p186
      %p188 = pneg %p187
      // Predicated region
      $region9: #{tpu_custom_call.1} parent=5 // pred_check
        _
      $region10: #{tpu_custom_call.1} parent=5 // pred_check_branch
        %190 = sbr.rel (%p187) target = $region12
      $region11: #{tpu_custom_call.1} parent=5 // pred_region
        %s191 = ssub.s32 %s20, 1
        // Predicated region
        $region13: #{tpu_custom_call.1} parent=11 // pred_check
          %p192 = pneg %p67
        $region14: #{tpu_custom_call.1} parent=11 // pred_check_branch
          %194 = sbr.rel (%p192) target = $region16
        $region15: #{tpu_custom_call.1} parent=11 // pred_region
          %s196 = ssub.s32 2048, 2048
          %197 = vsyncadd [#allocation6], %s196
          %s198 = sshll.u32 [#allocation5], 4
          %s199 = int_to_ptr.vmem [resolvable:$true] %s198
          %204 = dma.hbm_to_vmem [thread:$0]  %s1, 2048, %s199, [#allocation6], 128, 128, 8
        $region16: #{tpu_custom_call.1} parent=11 // pred_fallthru
          _
        // Predicated region
        $region17: #{tpu_custom_call.1} parent=11 // pred_check
          %p205 = pneg %p88
        $region18: #{tpu_custom_call.1} parent=11 // pred_check_branch
          %207 = sbr.rel (%p205) target = $region20
        $region19: #{tpu_custom_call.1} parent=11 // pred_region
          _
        $region20: #{tpu_custom_call.1} parent=11 // pred_fallthru
          _
        // Predicated region
        $region21: #{tpu_custom_call.1} parent=11 // pred_check
          %p208 = pneg %p109
        $region22: #{tpu_custom_call.1} parent=11 // pred_check_branch
          %210 = sbr.rel (%p208) target = $region24
        $region23: #{tpu_custom_call.1} parent=11 // pred_region
          %s212 = ssub.s32 2048, 2048
          %213 = vsyncadd [#allocation6], %s212
          %s214 = sshll.u32 [#allocation7], 4
          %s215 = int_to_ptr.vmem [resolvable:$true] %s214
          %220 = dma.hbm_to_vmem [thread:$0]  %s3, 2048, %s215, [#allocation6], 64, 64, 4
        $region24: #{tpu_custom_call.1} parent=11 // pred_fallthru
          _
        // Predicated region
        $region25: #{tpu_custom_call.1} parent=11 // pred_check
          %p221 = pneg %p130
        $region26: #{tpu_custom_call.1} parent=11 // pred_check_branch
          %223 = sbr.rel (%p221) target = $region28
        $region27: #{tpu_custom_call.1} parent=11 // pred_region
          _
        $region28: #{tpu_custom_call.1} parent=11 // pred_fallthru
          _
        // Predicated region
        $region29: #{tpu_custom_call.1} parent=11 // pred_check
          %p224 = pneg %p151
        $region30: #{tpu_custom_call.1} parent=11 // pred_check_branch
          %226 = sbr.rel (%p224) target = $region32
        $region31: #{tpu_custom_call.1} parent=11 // pred_region
          %s228 = ssub.s32 1024, 1024
          %229 = vsyncadd [#allocation9], %s228
          %s230 = sshll.u32 [#allocation8], 4
          %s231 = int_to_ptr.vmem [resolvable:$true] %s230
          %236 = dma.hbm_to_vmem [thread:$0]  %s5, 1024, %s231, [#allocation9], 64, 64, 4
        $region32: #{tpu_custom_call.1} parent=11 // pred_fallthru
          _
      $region12: #{tpu_custom_call.1} parent=5 // pred_fallthru
        _
      %p237 = scmp.lt.s32.totalorder %s20, 4
      // Predicated region
      $region33: #{tpu_custom_call.1} parent=5 // pred_check
        %p238 = pneg %p237
      $region34: #{tpu_custom_call.1} parent=5 // pred_check_branch
        %240 = sbr.rel (%p238) target = $region36
      $region35: #{tpu_custom_call.1} parent=5 // pred_region
        // Predicated region
        $region37: #{tpu_custom_call.1} parent=35 // pred_check
          %p241 = pneg %p40
        $region38: #{tpu_custom_call.1} parent=35 // pred_check_branch
          %243 = sbr.rel (%p241) target = $region40
        $region39: #{tpu_custom_call.1} parent=35 // pred_region
          %s244 = sand.u32 %s30, 1
          %s245 = scalar_lea.sflag [#allocation3], %s244
          %s246 = sand.u32 %s30, 1
          %s247 = smul.addr %s246, 80
          %s248 = scalar_lea.vmem [#allocation2], %s247
          %s249 = smul.u32 10, %s20
          %s250 = ssub.s32 38, %s249
          %p251 = scmp.lt.s32.totalorder %s250, 10
          %s252 = scalar_select %p251, %s250, 10
          %s253 = smul.u32 128, %s252
          %s255 = ssub.s32 1280, %s253
          %256 = vsyncadd %s245, %s255
          %p257 = scmp.ne.s32.totalorder 0, %s253
          %s258 = smul.addr %s249, 128
          %s259 = scalar_lea.hbm %s0, %s258
          %s260 = smul.u32 8, %s252
          %s261 = sshll.u32 %s248, 4
          %s262 = int_to_ptr.vmem [resolvable:$true] %s261
          %s263 = sshll.u32 %s260, 4
          %267 = dma.hbm_to_vmem [thread:$0]  (%p257), %s259, %s263, %s262, %s245, 128, 128, 8
        $region40: #{tpu_custom_call.1} parent=35 // pred_fallthru
          _
      $region36: #{tpu_custom_call.1} parent=5 // pred_fallthru
        _
      %p268 = scmp.le.s32.totalorder 1, %s20
      %p269 = scmp.lt.s32.totalorder %s20, 5
      %p270 = pnand %p268, %p269
      %p271 = pneg %p270
      // Predicated region
      $region41: #{tpu_custom_call.1} parent=5 // pred_check
        _
      $region42: #{tpu_custom_call.1} parent=5 // pred_check_branch
        %273 = sbr.rel (%p270) target = $region44
      $region43: #{tpu_custom_call.1} parent=5 // pred_region
        %s274 = ssub.s32 %s20, 1
        %s275 = sand.u32 %s33, 1
        %s276 = scalar_lea.sflag [#allocation3], %s275
        %s277 = sand.u32 %s33, 1
        %s278 = smul.addr %s277, 80
        %s279 = scalar_lea.vmem [#allocation2], %s278
        // Predicated region
        $region45: #{tpu_custom_call.1} parent=43 // pred_check
          %p280 = pneg %p46
        $region46: #{tpu_custom_call.1} parent=43 // pred_check_branch
          %282 = sbr.rel (%p280) target = $region48
        $region47: #{tpu_custom_call.1} parent=43 // pred_region
          %283 = dma.done %s276, 1280
        $region48: #{tpu_custom_call.1} parent=43 // pred_fallthru
          _
        // Predicated region
        $region49: #{tpu_custom_call.1} parent=43 // pred_check
          %p284 = pneg %p67
        $region50: #{tpu_custom_call.1} parent=43 // pred_check_branch
          %286 = sbr.rel (%p284) target = $region52
        $region51: #{tpu_custom_call.1} parent=43 // pred_region
          %287 = dma.done [#allocation6], 2048
        $region52: #{tpu_custom_call.1} parent=43 // pred_fallthru
          _
        // Predicated region
        $region53: #{tpu_custom_call.1} parent=43 // pred_check
          %p288 = pneg %p109
        $region54: #{tpu_custom_call.1} parent=43 // pred_check_branch
          %290 = sbr.rel (%p288) target = $region56
        $region55: #{tpu_custom_call.1} parent=43 // pred_region
          %291 = dma.done [#allocation6], 2048
        $region56: #{tpu_custom_call.1} parent=43 // pred_fallthru
          _
        // Predicated region
        $region57: #{tpu_custom_call.1} parent=43 // pred_check
          %p292 = pneg %p151
        $region58: #{tpu_custom_call.1} parent=43 // pred_check_branch
          %294 = sbr.rel (%p292) target = $region60
        $region59: #{tpu_custom_call.1} parent=43 // pred_region
          %295 = dma.done [#allocation9], 1024
        $region60: #{tpu_custom_call.1} parent=43 // pred_fallthru
          _
        %s296 = sand.u32 %s33, 1
        %s297 = scalar_lea.sflag [#allocation3], %s296
        %s298 = sand.u32 %s33, 1
        %s299 = smul.addr %s298, 80
        %s300 = scalar_lea.vmem [#allocation2], %s299
        %p301 = pneg %p46
        %p302 = pneg %p43
        %p303 = pneg %p67
        %p304 = pneg %p64
        %p305 = pneg %p88
        %p306 = pneg %p85
        %p307 = pneg %p109
        %p308 = pneg %p106
        %p309 = pneg %p130
        %p310 = pneg %p127
        %p311 = pneg %p151
        %p312 = pneg %p148
        %p313 = pneg %p177
        %p314 = pneg %p174
        %s315 = sand.u32 %s164, 1
        %s316 = scalar_lea.sflag [#allocation4], %s315
        %s317 = sand.u32 %s164, 1
        %s318 = smul.addr %s317, 40
        %s319 = scalar_lea.vmem [#allocation10], %s318
        %s320 = smul.u32 10, %s25
        %s321 = ssub.s32 38, %s320
        %p322 = scmp.lt.s32.totalorder %s321, 10
        %s323 = scalar_select %p322, %s321, 10
        %s324 = smul.u32 128, %s323
        %s325 = smul.u32 10, %s25
        %s326 = ssub.s32 38, %s325
        %p327 = scmp.lt.s32.totalorder %s326, 10
        %s328 = scalar_select %p327, %s326, 10
        %s329 = smul.u32 64, %s328
        %v331 = vld [vmem:[%s279] sm:$0xff]
        %v332 = vld [vmem:[%s279 + $0x8] sm:$0xff]
        %v333 = vld [vmem:[%s279 + $0x10] sm:$0xff]
        %v334 = vld [vmem:[%s279 + $0x18] sm:$0xff]
        %v335 = vld [vmem:[%s279 + $0x20] sm:$0xff]
        %v336 = vld [vmem:[%s279 + $0x28] sm:$0xff]
        %v337 = vld [vmem:[%s279 + $0x30] sm:$0xff]
        %v338 = vld [vmem:[%s279 + $0x38] sm:$0xff]
        %v339 = vld [vmem:[%s279 + $0x40] sm:$0xff]
        %v340 = vld [vmem:[%s279 + $0x48] sm:$0xff]
        %v341 = vpack.c.bf16 %v332, %v331
        %v342 = vpack.c.bf16 %v334, %v333
        %v343 = vpack.c.bf16 %v336, %v335
        %v344 = vpack.c.bf16 %v338, %v337
        %v345 = vpack.c.bf16 %v340, %v339
        %v346 = vld [vmem:[#allocation5] sm:$0xff]
        %v347 = vld [vmem:[#allocation5 + $0x8] sm:$0xff]
        %v348 = vld [vmem:[#allocation5 + $0x10] sm:$0xff]
        %v349 = vld [vmem:[#allocation5 + $0x18] sm:$0xff]
        %v350 = vld [vmem:[#allocation5 + $0x20] sm:$0xff]
        %v351 = vld [vmem:[#allocation5 + $0x28] sm:$0xff]
        %v352 = vld [vmem:[#allocation5 + $0x30] sm:$0xff]
        %v353 = vld [vmem:[#allocation5 + $0x38] sm:$0xff]
        %v354 = vld [vmem:[#allocation5 + $0x40] sm:$0xff]
        %v355 = vld [vmem:[#allocation5 + $0x48] sm:$0xff]
        %v356 = vld [vmem:[#allocation5 + $0x50] sm:$0xff]
        %v357 = vld [vmem:[#allocation5 + $0x58] sm:$0xff]
        %v358 = vld [vmem:[#allocation5 + $0x60] sm:$0xff]
        %v359 = vld [vmem:[#allocation5 + $0x68] sm:$0xff]
        %v360 = vld [vmem:[#allocation5 + $0x70] sm:$0xff]
        %v361 = vld [vmem:[#allocation5 + $0x78] sm:$0x11]
        %v362 = vld [vmem:[%s2] sm:$0x3]
        %v364 = vlaneseq
        %v365 = vshrl.u32 %v364, 7
        %v366 = vsub.s32 0, %v365
        %v367 = vrot.slane %v362, %v366
        %v368 = vlaneseq
        %v369 = vshrl.u32 %v368, 7
        %v370 = vsub.s32 1, %v369
        %v371 = vrot.slane %v362, %v370
        %v390 = vunpack.c.l.b16 %v346
        %v391 = vunpack.c.h.b16 %v346
        %v392 = vunpack.c.l.b16 %v347
        %v393 = vunpack.c.h.b16 %v347
        %v394 = vunpack.c.l.b16 %v348
        %v395 = vunpack.c.h.b16 %v348
        %v396 = vunpack.c.l.b16 %v349
        %v397 = vunpack.c.h.b16 %v349
        %v398 = vunpack.c.l.b16 %v350
        %v399 = vunpack.c.h.b16 %v350
        %v400 = vunpack.c.l.b16 %v351
        %v401 = vunpack.c.h.b16 %v351
        %v402 = vunpack.c.l.b16 %v352
        %v403 = vunpack.c.h.b16 %v352
        %v404 = vunpack.c.l.b16 %v353
        %v405 = vunpack.c.h.b16 %v353
        %v406 = vunpack.c.l.b16 %v354
        %v407 = vunpack.c.h.b16 %v354
        %v408 = vunpack.c.l.b16 %v355
        %v409 = vunpack.c.h.b16 %v355
        %v410 = vunpack.c.l.b16 %v356
        %v411 = vunpack.c.h.b16 %v356
        %v412 = vunpack.c.l.b16 %v357
        %v413 = vunpack.c.h.b16 %v357
        %v414 = vunpack.c.l.b16 %v358
        %v415 = vunpack.c.h.b16 %v358
        %v416 = vunpack.c.l.b16 %v359
        %v417 = vunpack.c.h.b16 %v359
        %v418 = vunpack.c.l.b16 %v360
        %v419 = vunpack.c.h.b16 %v360
        %v420 = vunpack.c.l.b16 %v361
        %v421 = vunpack.c.h.b16 %v361
        %v422 = vpack.c.b16 %v392, %v390
        %v423 = vpack.c.b16 %v393, %v391
        %v424 = vpack.c.b16 %v396, %v394
        %v425 = vpack.c.b16 %v397, %v395
        %v426 = vpack.c.b16 %v400, %v398
        %v427 = vpack.c.b16 %v401, %v399
        %v428 = vpack.c.b16 %v404, %v402
        %v429 = vpack.c.b16 %v405, %v403
        %v430 = vpack.c.b16 %v408, %v406
        %v431 = vpack.c.b16 %v409, %v407
        %v432 = vpack.c.b16 %v412, %v410
        %v433 = vpack.c.b16 %v413, %v411
        %v434 = vpack.c.b16 %v416, %v414
        %v435 = vpack.c.b16 %v417, %v415
        %v436 = vpack.c.b16 %v420, %v418
        %v437 = vpack.c.b16 %v421, %v419
        %vm452 = vcmask 990208
        %v454 = vsel %vm452, %v341, 0
        %v457 = vsel %vm452, %v342, 0
        %v460 = vsel %vm452, %v343, 0
        %v463 = vsel %vm452, %v344, 0
        %v466 = vsel %vm452, %v345, 0
        %vm468 = vcmask 1043456
        %vm469 = vcmask 1044480
        %v470 = vsel %vm468, 4294967295, 65535
        %v471 = vsel %vm469, %v470, 0
        %v473 = vand.u32 %v436, %v471
        %v476 = vand.u32 %v437, %v471
        %478 = vmatprep.subr.bf16.mxu0 %v476
        %479 = vmatpush1.bf16.msra.mxu0 %v473
        %480 = vmatprep.subr.bf16.mxu0 %v435
        %481 = vmatpush1.bf16.msra.mxu0 %v434
        %482 = vmatprep.subr.bf16.mxu0 %v433
        %483 = vmatpush1.bf16.msra.mxu0 %v432
        %484 = vmatprep.subr.bf16.mxu0 %v431
        %485 = vmatpush1.bf16.msra.mxu0 %v430
        %486 = vmatprep.subr.bf16.mxu0 %v429
        %487 = vmatpush1.bf16.msra.mxu0 %v428
        %488 = vmatprep.subr.bf16.mxu0 %v427
        %489 = vmatpush1.bf16.msra.mxu0 %v426
        %490 = vmatprep.subr.bf16.mxu0 %v425
        %491 = vmatpush1.bf16.msra.mxu0 %v424
        %492 = vmatprep.subr.bf16.mxu0 %v423
        %493 = vmatpush1.bf16.msra.mxu0 %v422
        %494 = vmatprep.subr.bf16.mxu0 0
        %495 = vmatpush2.bf16.msra.mxu0 0
        %496 = vmatprep.subr.bf16.mxu0 0
        %497 = vmatpush2.bf16.msra.mxu0 0
        %498 = vmatprep.subr.bf16.mxu0 0
        %499 = vmatpush2.bf16.msra.mxu0 0
        %500 = vmatprep.subr.bf16.mxu0 0
        %501 = vmatpush2.bf16.msra.mxu0 0
        %502 = vmatprep.subr.bf16.mxu0 0
        %503 = vmatpush2.bf16.msra.mxu0 0
        %504 = vmatprep.subr.bf16.mxu0 0
        %505 = vmatpush2.bf16.msra.mxu0 0
        %506 = vmatprep.subr.bf16.mxu0 0
        %507 = vmatpush2.bf16.msra.mxu0 0
        %508 = vmatprep.subr.bf16.mxu0 0
        %509 = vmatpush2.bf16.msra.mxu0 0
        %510 = vmatprep.mubr.bf16.mxu0 0
        %511 = vmatmul.mubr.bf16.gmra.mxu0 %v454
        %v512 = vpop.f32.mrf.mxu0
        %v513 = vadd.f32 %v367, %v512
        %v514 = vpop.f32.mrf.mxu0
        %v515 = vadd.f32 %v371, %v514
        %v516 = vpop.f32.mrf.mxu0
        %v517 = vadd.f32 %v367, %v516
        %v518 = vpop.f32.mrf.mxu0
        %v519 = vadd.f32 %v371, %v518
        %520 = vmatprep.mubr.bf16.mxu0 0
        %521 = vmatmul.mubr.bf16.gmra.mxu0 %v457
        %v522 = vpop.f32.mrf.mxu0
        %v523 = vadd.f32 %v367, %v522
        %v524 = vpop.f32.mrf.mxu0
        %v525 = vadd.f32 %v371, %v524
        %v526 = vpop.f32.mrf.mxu0
        %v527 = vadd.f32 %v367, %v526
        %v528 = vpop.f32.mrf.mxu0
        %v529 = vadd.f32 %v371, %v528
        %530 = vmatprep.mubr.bf16.mxu0 0
        %531 = vmatmul.mubr.bf16.gmra.mxu0 %v460
        %v532 = vpop.f32.mrf.mxu0
        %v533 = vadd.f32 %v367, %v532
        %v534 = vpop.f32.mrf.mxu0
        %v535 = vadd.f32 %v371, %v534
        %v536 = vpop.f32.mrf.mxu0
        %v537 = vadd.f32 %v367, %v536
        %v538 = vpop.f32.mrf.mxu0
        %v539 = vadd.f32 %v371, %v538
        %540 = vmatprep.mubr.bf16.mxu0 0
        %541 = vmatmul.mubr.bf16.gmra.mxu0 %v463
        %v542 = vpop.f32.mrf.mxu0
        %v543 = vadd.f32 %v367, %v542
        %v544 = vpop.f32.mrf.mxu0
        %v545 = vadd.f32 %v371, %v544
        %v546 = vpop.f32.mrf.mxu0
        %v547 = vadd.f32 %v367, %v546
        %v548 = vpop.f32.mrf.mxu0
        %v549 = vadd.f32 %v371, %v548
        %550 = vmatprep.mubr.bf16.mxu0 0
        %551 = vmatmul.mubr.bf16.gmra.mxu0 %v466
        %v552 = vpop.f32.mrf.mxu0
        %v553 = vadd.f32 %v367, %v552
        %v554 = vpop.f32.mrf.mxu0
        %v555 = vadd.f32 %v371, %v554
        %v556 = vpop.f32.mrf.mxu0
        %v557 = vadd.f32 %v367, %v556
        %v558 = vpop.f32.mrf.mxu0
        %v559 = vadd.f32 %v371, %v558
        %560 = vdwg.mxu0
        %v561 = vmax.f32 %v513, 0.0
        %v562 = vmax.f32 %v515, 0.0
        %v563 = vmax.f32 %v517, 0.0
        %v564 = vmax.f32 %v519, 0.0
        %v565 = vmax.f32 %v523, 0.0
        %v566 = vmax.f32 %v525, 0.0
        %v567 = vmax.f32 %v527, 0.0
        %v568 = vmax.f32 %v529, 0.0
        %v569 = vmax.f32 %v533, 0.0
        %v570 = vmax.f32 %v535, 0.0
        %v571 = vmax.f32 %v537, 0.0
        %v572 = vmax.f32 %v539, 0.0
        %v573 = vmax.f32 %v543, 0.0
        %v574 = vmax.f32 %v545, 0.0
        %v575 = vmax.f32 %v547, 0.0
        %v576 = vmax.f32 %v549, 0.0
        %v577 = vmax.f32 %v553, 0.0
        %v578 = vmax.f32 %v555, 0.0
        %v579 = vmax.f32 %v557, 0.0
        %v580 = vmax.f32 %v559, 0.0
        %v581 = vpack.c.bf16 %v563, %v561
        %v582 = vpack.c.bf16 %v564, %v562
        %v583 = vpack.c.bf16 %v567, %v565
        %v584 = vpack.c.bf16 %v568, %v566
        %v585 = vpack.c.bf16 %v571, %v569
        %v586 = vpack.c.bf16 %v572, %v570
        %v587 = vpack.c.bf16 %v575, %v573
        %v588 = vpack.c.bf16 %v576, %v574
        %v589 = vpack.c.bf16 %v579, %v577
        %v590 = vpack.c.bf16 %v580, %v578
        %v591 = vld [vmem:[#allocation7] sm:$0xf]
        %v592 = vld [vmem:[#allocation7 + $0x4] sm:$0xf]
        %v593 = vld [vmem:[#allocation7 + $0x8] sm:$0xf]
        %v594 = vld [vmem:[#allocation7 + $0xc] sm:$0xf]
        %v595 = vld [vmem:[#allocation7 + $0x10] sm:$0xf]
        %v596 = vld [vmem:[#allocation7 + $0x14] sm:$0xf]
        %v597 = vld [vmem:[#allocation7 + $0x18] sm:$0xf]
        %v598 = vld [vmem:[#allocation7 + $0x1c] sm:$0xf]
        %v599 = vld [vmem:[#allocation7 + $0x20] sm:$0xf]
        %v600 = vld [vmem:[#allocation7 + $0x24] sm:$0xf]
        %v601 = vld [vmem:[#allocation7 + $0x28] sm:$0xf]
        %v602 = vld [vmem:[#allocation7 + $0x2c] sm:$0xf]
        %v603 = vld [vmem:[#allocation7 + $0x30] sm:$0xf]
        %v604 = vld [vmem:[#allocation7 + $0x34] sm:$0xf]
        %v605 = vld [vmem:[#allocation7 + $0x38] sm:$0xf]
        %v606 = vld [vmem:[#allocation7 + $0x3c] sm:$0xf]
        %v607 = vld [vmem:[#allocation7 + $0x40] sm:$0xf]
        %v608 = vld [vmem:[#allocation7 + $0x44] sm:$0xf]
        %v609 = vld [vmem:[#allocation7 + $0x48] sm:$0xf]
        %v610 = vld [vmem:[#allocation7 + $0x4c] sm:$0xf]
        %v611 = vld [vmem:[#allocation7 + $0x50] sm:$0xf]
        %v612 = vld [vmem:[#allocation7 + $0x54] sm:$0xf]
        %v613 = vld [vmem:[#allocation7 + $0x58] sm:$0xf]
        %v614 = vld [vmem:[#allocation7 + $0x5c] sm:$0xf]
        %v615 = vld [vmem:[#allocation7 + $0x60] sm:$0xf]
        %v616 = vld [vmem:[#allocation7 + $0x64] sm:$0xf]
        %v617 = vld [vmem:[#allocation7 + $0x68] sm:$0xf]
        %v618 = vld [vmem:[#allocation7 + $0x6c] sm:$0xf]
        %v619 = vld [vmem:[#allocation7 + $0x70] sm:$0xf]
        %v620 = vld [vmem:[#allocation7 + $0x74] sm:$0xf]
        %v621 = vld [vmem:[#allocation7 + $0x78] sm:$0xf]
        %v622 = vld [vmem:[#allocation7 + $0x7c] sm:$0xf]
        %v623 = vld [vmem:[%s4] sm:$0x1]
        %v625 = vlaneseq
        %v626 = vshrl.u32 %v625, 7
        %v627 = vsub.s32 0, %v626
        %v628 = vrot.slane %v623, %v627
        %v662 = vunpack.c.l.b16 %v591
        %v663 = vunpack.c.l.b16 %v592
        %v664 = vunpack.c.l.b16 %v593
        %v665 = vunpack.c.l.b16 %v594
        %v666 = vunpack.c.l.b16 %v595
        %v667 = vunpack.c.l.b16 %v596
        %v668 = vunpack.c.l.b16 %v597
        %v669 = vunpack.c.l.b16 %v598
        %v670 = vunpack.c.l.b16 %v599
        %v671 = vunpack.c.l.b16 %v600
        %v672 = vunpack.c.l.b16 %v601
        %v673 = vunpack.c.l.b16 %v602
        %v674 = vunpack.c.l.b16 %v603
        %v675 = vunpack.c.l.b16 %v604
        %v676 = vunpack.c.l.b16 %v605
        %v677 = vunpack.c.l.b16 %v606
        %v678 = vunpack.c.l.b16 %v607
        %v679 = vunpack.c.l.b16 %v608
        %v680 = vunpack.c.l.b16 %v609
        %v681 = vunpack.c.l.b16 %v610
        %v682 = vunpack.c.l.b16 %v611
        %v683 = vunpack.c.l.b16 %v612
        %v684 = vunpack.c.l.b16 %v613
        %v685 = vunpack.c.l.b16 %v614
        %v686 = vunpack.c.l.b16 %v615
        %v687 = vunpack.c.l.b16 %v616
        %v688 = vunpack.c.l.b16 %v617
        %v689 = vunpack.c.l.b16 %v618
        %v690 = vunpack.c.l.b16 %v619
        %v691 = vunpack.c.l.b16 %v620
        %v692 = vunpack.c.l.b16 %v621
        %v693 = vunpack.c.l.b16 %v622
        %v694 = vpack.c.b16 %v663, %v662
        %v695 = vpack.c.b16 %v665, %v664
        %v696 = vpack.c.b16 %v667, %v666
        %v697 = vpack.c.b16 %v669, %v668
        %v698 = vpack.c.b16 %v671, %v670
        %v699 = vpack.c.b16 %v673, %v672
        %v700 = vpack.c.b16 %v675, %v674
        %v701 = vpack.c.b16 %v677, %v676
        %v702 = vpack.c.b16 %v679, %v678
        %v703 = vpack.c.b16 %v681, %v680
        %v704 = vpack.c.b16 %v683, %v682
        %v705 = vpack.c.b16 %v685, %v684
        %v706 = vpack.c.b16 %v687, %v686
        %v707 = vpack.c.b16 %v689, %v688
        %v708 = vpack.c.b16 %v691, %v690
        %v709 = vpack.c.b16 %v693, %v692
        %726 = vmatprep.subr.bf16.mxu0 0
        %727 = vmatpush1.bf16.msra.mxu0 %v701
        %728 = vmatprep.subr.bf16.mxu0 0
        %729 = vmatpush1.bf16.msra.mxu0 %v700
        %730 = vmatprep.subr.bf16.mxu0 0
        %731 = vmatpush1.bf16.msra.mxu0 %v699
        %732 = vmatprep.subr.bf16.mxu0 0
        %733 = vmatpush1.bf16.msra.mxu0 %v698
        %734 = vmatprep.subr.bf16.mxu0 0
        %735 = vmatpush1.bf16.msra.mxu0 %v697
        %736 = vmatprep.subr.bf16.mxu0 0
        %737 = vmatpush1.bf16.msra.mxu0 %v696
        %738 = vmatprep.subr.bf16.mxu0 0
        %739 = vmatpush1.bf16.msra.mxu0 %v695
        %740 = vmatprep.subr.bf16.mxu0 0
        %741 = vmatpush1.bf16.msra.mxu0 %v694
        %742 = vmatprep.subr.bf16.mxu0 0
        %743 = vmatpush2.bf16.msra.mxu0 %v709
        %744 = vmatprep.subr.bf16.mxu0 0
        %745 = vmatpush2.bf16.msra.mxu0 %v708
        %746 = vmatprep.subr.bf16.mxu0 0
        %747 = vmatpush2.bf16.msra.mxu0 %v707
        %748 = vmatprep.subr.bf16.mxu0 0
        %749 = vmatpush2.bf16.msra.mxu0 %v706
        %750 = vmatprep.subr.bf16.mxu0 0
        %751 = vmatpush2.bf16.msra.mxu0 %v705
        %752 = vmatprep.subr.bf16.mxu0 0
        %753 = vmatpush2.bf16.msra.mxu0 %v704
        %754 = vmatprep.subr.bf16.mxu0 0
        %755 = vmatpush2.bf16.msra.mxu0 %v703
        %756 = vmatprep.subr.bf16.mxu0 0
        %757 = vmatpush2.bf16.msra.mxu0 %v702
        %758 = vmatprep.mubr.bf16.mxu0 %v582
        %759 = vmatmul.mubr.bf16.gmra.mxu0 %v581
        %v760 = vpop.f32.mrf.mxu0
        %v761 = vadd.f32 %v628, %v760
        %v762 = vpop.f32.mrf.mxu0
        %v763 = vpop.f32.mrf.mxu0
        %v764 = vadd.f32 %v628, %v763
        %v765 = vpop.f32.mrf.mxu0
        %766 = vmatprep.mubr.bf16.mxu0 %v584
        %767 = vmatmul.mubr.bf16.gmra.mxu0 %v583
        %v768 = vpop.f32.mrf.mxu0
        %v769 = vadd.f32 %v628, %v768
        %v770 = vpop.f32.mrf.mxu0
        %v771 = vpop.f32.mrf.mxu0
        %v772 = vadd.f32 %v628, %v771
        %v773 = vpop.f32.mrf.mxu0
        %774 = vmatprep.mubr.bf16.mxu0 %v586
        %775 = vmatmul.mubr.bf16.gmra.mxu0 %v585
        %v776 = vpop.f32.mrf.mxu0
        %v777 = vadd.f32 %v628, %v776
        %v778 = vpop.f32.mrf.mxu0
        %v779 = vpop.f32.mrf.mxu0
        %v780 = vadd.f32 %v628, %v779
        %v781 = vpop.f32.mrf.mxu0
        %782 = vmatprep.mubr.bf16.mxu0 %v588
        %783 = vmatmul.mubr.bf16.gmra.mxu0 %v587
        %v784 = vpop.f32.mrf.mxu0
        %v785 = vadd.f32 %v628, %v784
        %v786 = vpop.f32.mrf.mxu0
        %v787 = vpop.f32.mrf.mxu0
        %v788 = vadd.f32 %v628, %v787
        %v789 = vpop.f32.mrf.mxu0
        %790 = vmatprep.mubr.bf16.mxu0 %v590
        %791 = vmatmul.mubr.bf16.gmra.mxu0 %v589
        %v792 = vpop.f32.mrf.mxu0
        %v793 = vadd.f32 %v628, %v792
        %v794 = vpop.f32.mrf.mxu0
        %v795 = vpop.f32.mrf.mxu0
        %v796 = vadd.f32 %v628, %v795
        %v797 = vpop.f32.mrf.mxu0
        %798 = vdwg.mxu0
        %v799 = vmax.f32 %v761, 0.0
        %v800 = vmax.f32 %v764, 0.0
        %v801 = vmax.f32 %v769, 0.0
        %v802 = vmax.f32 %v772, 0.0
        %v803 = vmax.f32 %v777, 0.0
        %v804 = vmax.f32 %v780, 0.0
        %v805 = vmax.f32 %v785, 0.0
        %v806 = vmax.f32 %v788, 0.0
        %v807 = vmax.f32 %v793, 0.0
        %v808 = vmax.f32 %v796, 0.0
        %v809 = vpack.c.bf16 %v800, %v799
        %v810 = vpack.c.bf16 %v802, %v801
        %v811 = vpack.c.bf16 %v804, %v803
        %v812 = vpack.c.bf16 %v806, %v805
        %v813 = vpack.c.bf16 %v808, %v807
        %v814 = vld [vmem:[#allocation8] sm:$0xf]
        %v815 = vld [vmem:[#allocation8 + $0x4] sm:$0xf]
        %v816 = vld [vmem:[#allocation8 + $0x8] sm:$0xf]
        %v817 = vld [vmem:[#allocation8 + $0xc] sm:$0xf]
        %v818 = vld [vmem:[#allocation8 + $0x10] sm:$0xf]
        %v819 = vld [vmem:[#allocation8 + $0x14] sm:$0xf]
        %v820 = vld [vmem:[#allocation8 + $0x18] sm:$0xf]
        %v821 = vld [vmem:[#allocation8 + $0x1c] sm:$0xf]
        %v822 = vld [vmem:[#allocation8 + $0x20] sm:$0xf]
        %v823 = vld [vmem:[#allocation8 + $0x24] sm:$0xf]
        %v824 = vld [vmem:[#allocation8 + $0x28] sm:$0xf]
        %v825 = vld [vmem:[#allocation8 + $0x2c] sm:$0xf]
        %v826 = vld [vmem:[#allocation8 + $0x30] sm:$0xf]
        %v827 = vld [vmem:[#allocation8 + $0x34] sm:$0xf]
        %v828 = vld [vmem:[#allocation8 + $0x38] sm:$0xf]
        %v829 = vld [vmem:[#allocation8 + $0x3c] sm:$0xf]
        %v846 = vunpack.c.l.b16 %v814
        %v847 = vunpack.c.l.b16 %v815
        %v848 = vunpack.c.l.b16 %v816
        %v849 = vunpack.c.l.b16 %v817
        %v850 = vunpack.c.l.b16 %v818
        %v851 = vunpack.c.l.b16 %v819
        %v852 = vunpack.c.l.b16 %v820
        %v853 = vunpack.c.l.b16 %v821
        %v854 = vunpack.c.l.b16 %v822
        %v855 = vunpack.c.l.b16 %v823
        %v856 = vunpack.c.l.b16 %v824
        %v857 = vunpack.c.l.b16 %v825
        %v858 = vunpack.c.l.b16 %v826
        %v859 = vunpack.c.l.b16 %v827
        %v860 = vunpack.c.l.b16 %v828
        %v861 = vunpack.c.l.b16 %v829
        %v862 = vpack.c.b16 %v847, %v846
        %v863 = vpack.c.b16 %v849, %v848
        %v864 = vpack.c.b16 %v851, %v850
        %v865 = vpack.c.b16 %v853, %v852
        %v866 = vpack.c.b16 %v855, %v854
        %v867 = vpack.c.b16 %v857, %v856
        %v868 = vpack.c.b16 %v859, %v858
        %v869 = vpack.c.b16 %v861, %v860
        %878 = vmatprep.subr.bf16.mxu0 0
        %879 = vmatpush1.bf16.msra.mxu0 %v869
        %880 = vmatprep.subr.bf16.mxu0 0
        %881 = vmatpush1.bf16.msra.mxu0 %v868
        %882 = vmatprep.subr.bf16.mxu0 0
        %883 = vmatpush1.bf16.msra.mxu0 %v867
        %884 = vmatprep.subr.bf16.mxu0 0
        %885 = vmatpush1.bf16.msra.mxu0 %v866
        %886 = vmatprep.subr.bf16.mxu0 0
        %887 = vmatpush1.bf16.msra.mxu0 %v865
        %888 = vmatprep.subr.bf16.mxu0 0
        %889 = vmatpush1.bf16.msra.mxu0 %v864
        %890 = vmatprep.subr.bf16.mxu0 0
        %891 = vmatpush1.bf16.msra.mxu0 %v863
        %892 = vmatprep.subr.bf16.mxu0 0
        %893 = vmatpush1.bf16.msra.mxu0 %v862
        %894 = vmatprep.subr.bf16.mxu0 0
        %895 = vmatpush2.bf16.msra.mxu0 0
        %896 = vmatprep.subr.bf16.mxu0 0
        %897 = vmatpush2.bf16.msra.mxu0 0
        %898 = vmatprep.subr.bf16.mxu0 0
        %899 = vmatpush2.bf16.msra.mxu0 0
        %900 = vmatprep.subr.bf16.mxu0 0
        %901 = vmatpush2.bf16.msra.mxu0 0
        %902 = vmatprep.subr.bf16.mxu0 0
        %903 = vmatpush2.bf16.msra.mxu0 0
        %904 = vmatprep.subr.bf16.mxu0 0
        %905 = vmatpush2.bf16.msra.mxu0 0
        %906 = vmatprep.subr.bf16.mxu0 0
        %907 = vmatpush2.bf16.msra.mxu0 0
        %908 = vmatprep.subr.bf16.mxu0 0
        %909 = vmatpush2.bf16.msra.mxu0 0
        %910 = vmatprep.mubr.bf16.mxu0 0
        %911 = vmatmul.mubr.bf16.gmra.mxu0 %v809
        %v912 = vpop.f32.mrf.mxu0
        %v913 = vadd.f32 0.0, %v912
        %v914 = vpop.f32.mrf.mxu0
        %v915 = vpop.f32.mrf.mxu0
        %v916 = vadd.f32 0.0, %v915
        %v917 = vpop.f32.mrf.mxu0
        %918 = vmatprep.mubr.bf16.mxu0 0
        %919 = vmatmul.mubr.bf16.gmra.mxu0 %v810
        %v920 = vpop.f32.mrf.mxu0
        %v921 = vadd.f32 0.0, %v920
        %v922 = vpop.f32.mrf.mxu0
        %v923 = vpop.f32.mrf.mxu0
        %v924 = vadd.f32 0.0, %v923
        %v925 = vpop.f32.mrf.mxu0
        %926 = vmatprep.mubr.bf16.mxu0 0
        %927 = vmatmul.mubr.bf16.gmra.mxu0 %v811
        %v928 = vpop.f32.mrf.mxu0
        %v929 = vadd.f32 0.0, %v928
        %v930 = vpop.f32.mrf.mxu0
        %v931 = vpop.f32.mrf.mxu0
        %v932 = vadd.f32 0.0, %v931
        %v933 = vpop.f32.mrf.mxu0
        %934 = vmatprep.mubr.bf16.mxu0 0
        %935 = vmatmul.mubr.bf16.gmra.mxu0 %v812
        %v936 = vpop.f32.mrf.mxu0
        %v937 = vadd.f32 0.0, %v936
        %v938 = vpop.f32.mrf.mxu0
        %v939 = vpop.f32.mrf.mxu0
        %v940 = vadd.f32 0.0, %v939
        %v941 = vpop.f32.mrf.mxu0
        %942 = vmatprep.mubr.bf16.mxu0 0
        %943 = vmatmul.mubr.bf16.gmra.mxu0 %v813
        %v944 = vpop.f32.mrf.mxu0
        %v945 = vadd.f32 0.0, %v944
        %v946 = vpop.f32.mrf.mxu0
        %v947 = vpop.f32.mrf.mxu0
        %v948 = vadd.f32 0.0, %v947
        %v949 = vpop.f32.mrf.mxu0
        %950 = vdwg.mxu0
        %v951 = vpack.c.bf16 %v916, %v913
        %v952 = vpack.c.bf16 %v924, %v921
        %v953 = vpack.c.bf16 %v932, %v929
        %v954 = vpack.c.bf16 %v940, %v937
        %v955 = vpack.c.bf16 %v948, %v945
        %v961 = vunpack.c.l.b16 %v951
        %v962 = vunpack.c.h.b16 %v951
        %v963 = vunpack.c.l.b16 %v952
        %v964 = vunpack.c.h.b16 %v952
        %v965 = vunpack.c.l.b16 %v953
        %v966 = vunpack.c.h.b16 %v953
        %v967 = vunpack.c.l.b16 %v954
        %v968 = vunpack.c.h.b16 %v954
        %v969 = vunpack.c.l.b16 %v955
        %v970 = vunpack.c.h.b16 %v955
        %v971 = vpack.c.b16 %v961, %v961
        %v972 = vpack.c.b16 %v962, %v962
        %v973 = vpack.c.b16 %v963, %v963
        %v974 = vpack.c.b16 %v964, %v964
        %v975 = vpack.c.b16 %v965, %v965
        %v976 = vpack.c.b16 %v966, %v966
        %v977 = vpack.c.b16 %v967, %v967
        %v978 = vpack.c.b16 %v968, %v968
        %v979 = vpack.c.b16 %v969, %v969
        %v980 = vpack.c.b16 %v970, %v970
        %991 = vst [vmem:[%s319] sm:$0xf] %v971
        %992 = vst [vmem:[%s319 + $0x4] sm:$0xf] %v972
        %993 = vst [vmem:[%s319 + $0x8] sm:$0xf] %v973
        %994 = vst [vmem:[%s319 + $0xc] sm:$0xf] %v974
        %995 = vst [vmem:[%s319 + $0x10] sm:$0xf] %v975
        %996 = vst [vmem:[%s319 + $0x14] sm:$0xf] %v976
        %997 = vst [vmem:[%s319 + $0x18] sm:$0xf] %v977
        %998 = vst [vmem:[%s319 + $0x1c] sm:$0xf] %v978
        %999 = vst [vmem:[%s319 + $0x20] sm:$0xf] %v979
        %1000 = vst [vmem:[%s319 + $0x24] sm:$0xf] %v980
        %s1001 = sand.u32 %s164, 1
        %s1002 = scalar_lea.sflag [#allocation4], %s1001
        %s1003 = sand.u32 %s164, 1
        %s1004 = smul.addr %s1003, 40
        %s1005 = scalar_lea.vmem [#allocation10], %s1004
        // Predicated region
        $region61: #{tpu_custom_call.1} parent=43 // pred_check
          %p1006 = pneg %p174
        $region62: #{tpu_custom_call.1} parent=43 // pred_check_branch
          %1008 = sbr.rel (%p1006) target = $region64
        $region63: #{tpu_custom_call.1} parent=43 // pred_region
          %s1009 = smul.u32 10, %s25
          %s1010 = ssub.s32 38, %s1009
          %p1011 = scmp.lt.s32.totalorder %s1010, 10
          %s1012 = scalar_select %p1011, %s1010, 10
          %s1013 = smul.u32 64, %s1012
          %s1015 = ssub.s32 640, %s1013
          %1016 = vsyncadd %s1002, %s1015
          %p1017 = scmp.ne.s32.totalorder 0, %s1013
          %s1018 = smul.addr %s1009, 64
          %s1019 = scalar_lea.hbm %s6, %s1018
          %s1020 = smul.u32 4, %s1012
          %s1021 = sshll.u32 %s1005, 4
          %s1022 = int_to_ptr.vmem [resolvable:$true] %s1021
          %s1023 = sshll.u32 %s1020, 4
          %1027 = dma.vmem_to_hbm [thread:$0]  (%p1017), %s1022, %s1023, %s1019, %s1002, 64, 64, 4
        $region64: #{tpu_custom_call.1} parent=43 // pred_fallthru
          _
      $region44: #{tpu_custom_call.1} parent=5 // pred_fallthru
        _
      %p1028 = scmp.le.s32.totalorder 2, %s20
      // Predicated region
      $region65: #{tpu_custom_call.1} parent=5 // pred_check
        %p1029 = pneg %p1028
      $region66: #{tpu_custom_call.1} parent=5 // pred_check_branch
        %1031 = sbr.rel (%p1029) target = $region68
      $region67: #{tpu_custom_call.1} parent=5 // pred_region
        %s1032 = ssub.s32 %s20, 2
        // Predicated region
        $region69: #{tpu_custom_call.1} parent=67 // pred_check
          %p1033 = pneg %p180
        $region70: #{tpu_custom_call.1} parent=67 // pred_check_branch
          %1035 = sbr.rel (%p1033) target = $region72
        $region71: #{tpu_custom_call.1} parent=67 // pred_region
          %s1036 = sand.u32 %s165, 1
          %s1037 = scalar_lea.sflag [#allocation4], %s1036
          %s1038 = sand.u32 %s165, 1
          %s1039 = smul.addr %s1038, 40
          %s1040 = scalar_lea.vmem [#allocation10], %s1039
          %1041 = dma.done %s1037, 640
        $region72: #{tpu_custom_call.1} parent=67 // pred_fallthru
          _
      $region68: #{tpu_custom_call.1} parent=5 // pred_fallthru
        _
    $region6: #{tpu_custom_call.1} parent=1 // loop_footer
      %s24 = sadd.s32 1, %s20
    $region7: #{tpu_custom_call.1} parent=1 // loop_footer_branch
      %19 = sbr.rel target = $region3
    $region8: #{tpu_custom_call.1} parent=1 // loop_exit
      _
    %1042 = vsyncpa [#allocation3], 1
    %s1043 = scalar_lea.sflag [#allocation3], 1
    %1044 = vsyncpa %s1043, 1
    %1045 = vsyncpa [#allocation6], 1
    %1046 = vsyncpa [#allocation9], 1
    %1047 = vsyncpa [#allocation4], 1
    %s1048 = scalar_lea.sflag [#allocation4], 1
    %1049 = vsyncpa %s1048, 1

</llo_original>
